<compile_context>
chip_gen: v5e
topology: v5e:2x2
jax: 0.10.0
libtpu: 0.0.40
codegen_flags: <defaults>
</compile_context>

<pallas_src>
import functools

import jax
import jax.numpy as jnp
from jax.experimental import pallas as pl
from jax.experimental.pallas import tpu as pltpu


def ensemble_kernel(x_ref, w_ref, b_ref, o_ref, *, inv_m):
    # x_ref: (tb, H) f32 | w_ref: (M, H, tc) f32 | b_ref: (M, tc) f32
    # Ensemble reduction over models: plain VALU adds over the leading axis
    # (one add per element DMA'd -> fully hidden under the weight DMA).
    w_sum = jnp.sum(w_ref[...], axis=0)                       # (H, tc), f32
    b_sum = jnp.sum(b_ref[...], axis=0, keepdims=True)        # (1, tc), f32

    # Single MXU matmul per output tile: bf16 inputs, f32 accumulation.
    acc = jnp.dot(
        x_ref[...].astype(jnp.bfloat16),
        w_sum.astype(jnp.bfloat16),
        preferred_element_type=jnp.float32,
    )                                                          # (tb, tc)

    # (sum_m logits_m) / M  ==  mean over the model dimension.
    o_ref[...] = (acc + b_sum) * inv_m


def model_ensemble(x, w, b, *, tb=None, tc=None):
    """x: (B, H) f32, w: (M, H, C) f32, b: (M, C) f32 -> (B, C) f32."""
    B, H = x.shape
    M, H2, C = w.shape
    assert H2 == H and b.shape == (M, C)

    tb = B if tb is None else tb
    tc = C if tc is None else tc
    assert B % tb == 0 and C % tc == 0
    # (8, 128) layout rule: block dims must be full-extent or (8, 128)-multiples.
    assert tb == B or tb % 8 == 0
    assert tc == C or tc % 128 == 0

    grid = (pl.cdiv(B, tb), pl.cdiv(C, tc))
    kernel = functools.partial(ensemble_kernel, inv_m=1.0 / M)

    return pl.pallas_call(
        kernel,
        out_shape=jax.ShapeDtypeStruct((B, C), jnp.float32),
        grid_spec=pltpu.PrefetchScalarGridSpec(
            num_scalar_prefetch=0,
            grid=grid,
            in_specs=[
                pl.BlockSpec((tb, H), lambda i, j: (i, 0)),        # activations
                pl.BlockSpec((M, H, tc), lambda i, j: (0, 0, j)),  # all M heads
                pl.BlockSpec((M, tc), lambda i, j: (0, j)),        # all M biases
            ],
            out_specs=pl.BlockSpec((tb, tc), lambda i, j: (i, j)),
        ),
        compiler_params=pltpu.CompilerParams(
            dimension_semantics=("parallel", "parallel"),
        ),
    )(x, w, b)


if __name__ == "__main__":
    key = jax.random.PRNGKey(0)
    k_x, k_w, k_b = jax.random.split(key, 3)

    M = 4      # number of models in the ensemble
    B = 8      # batch
    H = 32     # hidden size feeding each classifier head
    C = 128    # number of classes (lane-dense output)

    x = jax.random.normal(k_x, (B, H), dtype=jnp.float32)
    w = jax.random.normal(k_w, (M, H, C), dtype=jnp.float32) * 0.05
    b = jax.random.normal(k_b, (M, C), dtype=jnp.float32) * 0.1

    out = model_ensemble(x, w, b)
    out = jax.block_until_ready(out)

    # pure-JAX f32 reference: stack per-model logits, mean over model dim.
    ref = jnp.mean(jnp.einsum("bh,mhc->mbc", x, w) + b[:, None, :], axis=0)
    assert out.shape == (B, C)
    # bf16 matmul inputs (f32 weight-sum + f32 accumulation) -> loose tolerance.
    assert jnp.allclose(out, ref, atol=2e-2, rtol=2e-2)

    print("KERNEL_OK")
</pallas_src>

<mosaic_0001>
module attributes {stable_mosaic.version = 11 : i64} {
  func.func @ensemble_kernel(%arg0: i32, %arg1: i32, %arg2: memref<8x32xf32, #tpu.memory_space<vmem>>, %arg3: memref<4x32x128xf32, #tpu.memory_space<vmem>>, %arg4: memref<4x128xf32, #tpu.memory_space<vmem>>, %arg5: memref<8x128xf32, #tpu.memory_space<vmem>>) attributes {dimension_semantics = [#tpu.dimension_semantics<parallel>, #tpu.dimension_semantics<parallel>], iteration_bounds = array<i64: 1, 1>, scalar_prefetch = 0 : i64, scratch_operands = 0 : i64, tpu.core_type = #tpu.core_type<tc>, window_params = [{transform_indices = @transform_0, window_bounds = array<i64: 8, 32>}, {transform_indices = @transform_1, window_bounds = array<i64: 4, 32, 128>}, {transform_indices = @transform_2, window_bounds = array<i64: 4, 128>}, {transform_indices = @transform_3, window_bounds = array<i64: 8, 128>}]} {
    %c0 = arith.constant 0 : index
    %c0_0 = arith.constant 0 : index
    %c0_1 = arith.constant 0 : index
    %0 = vector.load %arg3[%c0, %c0_0, %c0_1] : memref<4x32x128xf32, #tpu.memory_space<vmem>>, vector<4x32x128xf32>
    %cst = arith.constant dense<0.000000e+00> : vector<32x128xf32>
    %1 = vector.multi_reduction <add>, %0, %cst [0] : vector<4x32x128xf32> to vector<32x128xf32>
    %c0_2 = arith.constant 0 : index
    %c0_3 = arith.constant 0 : index
    %2 = vector.load %arg4[%c0_2, %c0_3] : memref<4x128xf32, #tpu.memory_space<vmem>>, vector<4x128xf32>
    %cst_4 = arith.constant dense<0.000000e+00> : vector<128xf32>
    %3 = vector.multi_reduction <add>, %2, %cst_4 [0] : vector<4x128xf32> to vector<128xf32>
    %4 = vector.shape_cast %3 : vector<128xf32> to vector<1x128xf32>
    %c0_5 = arith.constant 0 : index
    %c0_6 = arith.constant 0 : index
    %5 = vector.load %arg2[%c0_5, %c0_6] : memref<8x32xf32, #tpu.memory_space<vmem>>, vector<8x32xf32>
    %6 = arith.truncf %5 : vector<8x32xf32> to vector<8x32xbf16>
    %7 = arith.truncf %1 : vector<32x128xf32> to vector<32x128xbf16>
    %cst_7 = arith.constant dense<0.000000e+00> : vector<8x128xf32>
    %8 = tpu.matmul %6, %7, %cst_7 {dimension_numbers = #tpu.dot_dimension_numbers<[1], [0], [0], [1], [0, 0, 1, 1], [], []>} : vector<8x32xbf16>, vector<32x128xbf16>, vector<8x128xf32> -> vector<8x128xf32>
    %9 = vector.broadcast %4 : vector<1x128xf32> to vector<8x128xf32>
    %10 = arith.addf %8, %9 : vector<8x128xf32>
    %cst_8 = arith.constant 2.500000e-01 : f32
    %11 = vector.broadcast %cst_8 : f32 to vector<8x128xf32>
    %12 = arith.mulf %10, %11 : vector<8x128xf32>
    %c0_9 = arith.constant 0 : index
    %c0_10 = arith.constant 0 : index
    %13 = vector.load %arg5[%c0_9, %c0_10] : memref<8x128xf32, #tpu.memory_space<vmem>>, vector<8x128xf32>
    tpu.vector_store %arg5[%c0_9, %c0_10], %12 {strides = array<i32>} : memref<8x128xf32, #tpu.memory_space<vmem>>, vector<8x128xf32>,
    return
  }
  func.func @transform_0(%arg0: i32, %arg1: i32) -> (i32, i32) {
    %c0_i32 = arith.constant 0 : i32
    %c0_i32_0 = arith.constant 0 : i32
    return %arg0, %c0_i32 : i32, i32
  }
  func.func @transform_1(%arg0: i32, %arg1: i32) -> (i32, i32, i32) {
    %c0_i32 = arith.constant 0 : i32
    %c0_i32_0 = arith.constant 0 : i32
    %c0_i32_1 = arith.constant 0 : i32
    return %c0_i32, %c0_i32_0, %arg1 : i32, i32, i32
  }
  func.func @transform_2(%arg0: i32, %arg1: i32) -> (i32, i32) {
    %c0_i32 = arith.constant 0 : i32
    %c0_i32_0 = arith.constant 0 : i32
    return %c0_i32, %arg1 : i32, i32
  }
  func.func @transform_3(%arg0: i32, %arg1: i32) -> (i32, i32) {
    %c0_i32 = arith.constant 0 : i32
    return %arg0, %arg1 : i32, i32
  }
}

</mosaic_0001>

<llo_original>
// kernel: tpu_custom_call.1
$region0: #{tpu_custom_call.1}
  #allocation0 [shape = 'u32[]', space=smem, size = 0x4, offset = 0x4, fixed_abs, tag = 'smem constant byte address 0x4 - core index']
  #allocation1 [shape = 'u32[72,128]{1,0:T(1,128)}', space=vmem, size = 0x9000, scoped, tag = 'internal scratch']
  %s0 = inlined_call_operand.hbm [shape: f32[8,32], index: 0, kind: input, shape index: {}]
  %s1 = inlined_call_operand.hbm [shape: f32[4,32,128], index: 1, kind: input, shape index: {}]
  %s2 = inlined_call_operand.hbm [shape: f32[4,128], index: 2, kind: input, shape index: {}]
  %s3 = inlined_call_operand.hbm [shape: f32[8,128], index: 3, kind: output, shape index: {}]
  %s4 = sld [smem:[#allocation0]]
  $region34: #{tpu_custom_call.1} parent=0
    _
  %s6 = ssub.s32 1, %s4
  %s7 = scalar_select 0, %s6, %s4
  $region1: #{tpu_custom_call.1} parent=0
    #allocation2 [shape = 'u8[4096]{0}', space=vmem, size = 0x1000, scoped, tag = 'input window, operand 0, single buffered']
    #allocation3 [shape = 's32[1]{0}', space=sflag, size = 0x4, scoped, tag = 'scoped memory for tpu_custom_call.1']
    #allocation4 [shape = 's32[1]{0}', space=sflag, size = 0x4, scoped, tag = 'scoped memory for tpu_custom_call.1']
    #allocation5 [shape = 'u8[65536]{0}', space=vmem, size = 0x10000, scoped, tag = 'input window, operand 1, single buffered']
    #allocation6 [shape = 's32[1]{0}', space=sflag, size = 0x4, scoped, tag = 'scoped memory for tpu_custom_call.1']
    #allocation7 [shape = 'u8[2048]{0}', space=vmem, size = 0x800, scoped, tag = 'input window, operand 2, single buffered']
    #allocation8 [shape = 'u8[4096]{0}', space=vmem, size = 0x1000, scoped, tag = 'output window, operand 0, single buffered']
    %8 = vsyncpa [#allocation3], 0
    %9 = vsyncpa [#allocation6], 0
    %10 = vsyncpa [#allocation4], 0
    // Predicated region
    $region2: #{tpu_custom_call.1} parent=1 // pred_check
      _
    $region3: #{tpu_custom_call.1} parent=1 // pred_check_branch
      %12 = sbr.rel (0) target = $region5
    $region4: #{tpu_custom_call.1} parent=1 // pred_region
      %14 = vsyncadd [#allocation3], 0
      %s16 = sshll.u32 %s0, 4
      %s17 = int_to_ptr.hbm [resolvable:$true] %s16
      %s18 = sshll.u32 [#allocation2], 4
      %s19 = int_to_ptr.vmem [resolvable:$true] %s18
      %21 = dma.hbm_to_vmem [thread:$0]  %s17, 128, %s19, [#allocation3]
    $region5: #{tpu_custom_call.1} parent=1 // pred_fallthru
      _
    // Predicated region
    $region6: #{tpu_custom_call.1} parent=1 // pred_check
      _
    $region7: #{tpu_custom_call.1} parent=1 // pred_check_branch
      %23 = sbr.rel (0) target = $region9
    $region8: #{tpu_custom_call.1} parent=1 // pred_region
      %25 = vsyncadd [#allocation6], 0
      %s26 = sshll.u32 %s1, 4
      %s27 = int_to_ptr.hbm [resolvable:$true] %s26
      %s28 = sshll.u32 [#allocation5], 4
      %s29 = int_to_ptr.vmem [resolvable:$true] %s28
      %34 = dma.hbm_to_vmem [thread:$0]  %s27, 2048, %s29, [#allocation6], 128, 128, 8
    $region9: #{tpu_custom_call.1} parent=1 // pred_fallthru
      _
    // Predicated region
    $region10: #{tpu_custom_call.1} parent=1 // pred_check
      _
    $region11: #{tpu_custom_call.1} parent=1 // pred_check_branch
      %36 = sbr.rel (0) target = $region13
    $region12: #{tpu_custom_call.1} parent=1 // pred_region
      %38 = vsyncadd [#allocation6], 0
      %s40 = sshll.u32 %s2, 4
      %s41 = int_to_ptr.hbm [resolvable:$true] %s40
      %s42 = sshll.u32 [#allocation7], 4
      %s43 = int_to_ptr.vmem [resolvable:$true] %s42
      %45 = dma.hbm_to_vmem [thread:$0]  %s41, 64, %s43, [#allocation6]
    $region13: #{tpu_custom_call.1} parent=1 // pred_fallthru
      _
    // Predicated region
    $region14: #{tpu_custom_call.1} parent=1 // pred_check
      _
    $region15: #{tpu_custom_call.1} parent=1 // pred_check_branch
      %47 = sbr.rel (0) target = $region17
    $region16: #{tpu_custom_call.1} parent=1 // pred_region
      %49 = dma.done [#allocation3], 128
    $region17: #{tpu_custom_call.1} parent=1 // pred_fallthru
      _
    // Predicated region
    $region18: #{tpu_custom_call.1} parent=1 // pred_check
      _
    $region19: #{tpu_custom_call.1} parent=1 // pred_check_branch
      %51 = sbr.rel (0) target = $region21
    $region20: #{tpu_custom_call.1} parent=1 // pred_region
      %53 = dma.done [#allocation6], 2048
    $region21: #{tpu_custom_call.1} parent=1 // pred_fallthru
      _
    // Predicated region
    $region22: #{tpu_custom_call.1} parent=1 // pred_check
      _
    $region23: #{tpu_custom_call.1} parent=1 // pred_check_branch
      %55 = sbr.rel (0) target = $region25
    $region24: #{tpu_custom_call.1} parent=1 // pred_region
      %57 = dma.done [#allocation6], 64
    $region25: #{tpu_custom_call.1} parent=1 // pred_fallthru
      _
    %v59 = vld [vmem:[#allocation5] sm:$0xff]
    %v60 = vld [vmem:[#allocation5 + $0x8] sm:$0xff]
    %v61 = vld [vmem:[#allocation5 + $0x10] sm:$0xff]
    %v62 = vld [vmem:[#allocation5 + $0x18] sm:$0xff]
    %v63 = vld [vmem:[#allocation5 + $0x20] sm:$0xff]
    %v64 = vld [vmem:[#allocation5 + $0x28] sm:$0xff]
    %v65 = vld [vmem:[#allocation5 + $0x30] sm:$0xff]
    %v66 = vld [vmem:[#allocation5 + $0x38] sm:$0xff]
    %v67 = vld [vmem:[#allocation5 + $0x40] sm:$0xff]
    %v68 = vld [vmem:[#allocation5 + $0x48] sm:$0xff]
    %v69 = vld [vmem:[#allocation5 + $0x50] sm:$0xff]
    %v70 = vld [vmem:[#allocation5 + $0x58] sm:$0xff]
    %v71 = vld [vmem:[#allocation5 + $0x60] sm:$0xff]
    %v72 = vld [vmem:[#allocation5 + $0x68] sm:$0xff]
    %v73 = vld [vmem:[#allocation5 + $0x70] sm:$0xff]
    %v74 = vld [vmem:[#allocation5 + $0x78] sm:$0xff]
    %v75 = vadd.f32 %v59, %v63
    %v76 = vadd.f32 %v75, %v67
    %v77 = vadd.f32 %v76, %v71
    %v78 = vadd.f32 %v60, %v64
    %v79 = vadd.f32 %v78, %v68
    %v80 = vadd.f32 %v79, %v72
    %v81 = vadd.f32 %v61, %v65
    %v82 = vadd.f32 %v81, %v69
    %v83 = vadd.f32 %v82, %v73
    %v84 = vadd.f32 %v62, %v66
    %v85 = vadd.f32 %v84, %v70
    %v86 = vadd.f32 %v85, %v74
    %v87 = vld [vmem:[#allocation7] sm:$0xf]
    %vm88 = vcmask 1043456
    %v89 = vsel %vm88, %v87, 0.0
    %v90 = vrot.slane %v89, 4
    %v91 = vadd.f32 %v89, %v90
    %v92 = vrot.slane %v91, 2
    %v93 = vadd.f32 %v91, %v92
    %v94 = vrot.slane %v93, 1
    %v95 = vadd.f32 %v93, %v94
    %v96 = vld [vmem:[#allocation2] sm:$0xff]
    %v97 = vpack.c.bf16 %v96, %v96
    %v98 = vpack.c.bf16 %v80, %v77
    %v99 = vpack.c.bf16 %v86, %v83
    %vm100 = vcmask 261120
    %v102 = vsel %vm100, %v97, 0
    %104 = vmatpush.bf16.msra.mxu0 0
    %105 = vmatpush.bf16.msra.mxu0 0
    %106 = vmatpush.bf16.msra.mxu0 0
    %107 = vmatpush.bf16.msra.mxu0 0
    %108 = vmatpush.bf16.msra.mxu0 0
    %109 = vmatpush.bf16.msra.mxu0 0
    %110 = vmatpush.bf16.msra.mxu0 %v99
    %111 = vmatpush.bf16.msra.mxu0 %v98
    %112 = vmatmul.bf16.gmra.mxu0 %v102
    %v113 = vpop.f32.mrf.mxu0
    %v114 = vadd.f32 %v95, %v113
    %v115 = vpop.f32.mrf.mxu0
    %116 = vdwg.mxu0
    %v117 = vmul.f32 %v114, 0.25
    %118 = vst [vmem:[#allocation8] sm:$0xff] %v117
    // Predicated region
    $region26: #{tpu_custom_call.1} parent=1 // pred_check
      _
    $region27: #{tpu_custom_call.1} parent=1 // pred_check_branch
      %120 = sbr.rel (0) target = $region29
    $region28: #{tpu_custom_call.1} parent=1 // pred_region
      %122 = vsyncadd [#allocation4], 0
      %s124 = sshll.u32 [#allocation8], 4
      %s125 = int_to_ptr.vmem [resolvable:$true] %s124
      %s126 = sshll.u32 %s3, 4
      %s127 = int_to_ptr.hbm [resolvable:$true] %s126
      %129 = dma.vmem_to_hbm [thread:$0]  %s125, 128, %s127, [#allocation4]
    $region29: #{tpu_custom_call.1} parent=1 // pred_fallthru
      _
    // Predicated region
    $region30: #{tpu_custom_call.1} parent=1 // pred_check
      _
    $region31: #{tpu_custom_call.1} parent=1 // pred_check_branch
      %131 = sbr.rel (0) target = $region33
    $region32: #{tpu_custom_call.1} parent=1 // pred_region
      %133 = dma.done [#allocation4], 128
    $region33: #{tpu_custom_call.1} parent=1 // pred_fallthru
      _
    %134 = vsyncpa [#allocation3], 1
    %135 = vsyncpa [#allocation6], 1
    %136 = vsyncpa [#allocation4], 1

</llo_original>
